<compile_context>
chip_gen: v7x
topology: tpu7x:2x2x1
jax: 0.10.0
libtpu: 0.0.40
codegen_flags: <defaults>
</compile_context>

<pallas_src>
import functools

import jax
import jax.numpy as jnp
from jax import lax
from jax.experimental import pallas as pl
from jax.experimental.pallas import tpu as pltpu

# TODO(synk): original Config.weight_pos_loss / weight_player_loss values are
# unknown; using fixed constants here.
WEIGHT_POS_LOSS = 1.0
WEIGHT_PLAYER_LOSS = 0.5

IGNORE_INDEX = -100  # torch.nn.CrossEntropyLoss default


def _tile_ce_sums(logits, labels, valid):
    """Whole-tile folded CE reduction.

    logits: (T, C) float tile; labels: (T, 1) int32; valid: (T, 1) bool mask
    (False for ignore_index rows AND for out-of-range padded rows).  Rows with
    valid == False contribute nothing, so garbage data in OOB rows (including
    NaN/Inf) is excluded via jnp.where selection (never multiplied in).
    Returns (sum of per-row CE over valid rows, number of valid rows).
    """
    x = logits.astype(jnp.float32)                                # (T, C)
    # TODO(synk): on v7x with bf16 inputs the single EUP becomes the binding
    # unit; a bf16 exp (after max-subtract) would relieve it, but f32 exp is
    # kept for v5e compatibility and accuracy.
    t, c = x.shape
    m = jnp.max(x, axis=1, keepdims=True)                         # (T, 1)
    lse = jnp.log(jnp.sum(jnp.exp(x - m), axis=1, keepdims=True)) + m
    col = lax.broadcasted_iota(jnp.int32, (t, c), 1)              # (T, C)
    picked_sum = jnp.sum(jnp.where((col == labels) & valid, x, 0.0))
    lse_sum = jnp.sum(jnp.where(valid, lse, 0.0))
    return lse_sum - picked_sum, jnp.sum(valid.astype(jnp.float32))


def _multi_ce_kernel(labels_ref, pos_logits_ref, player_logits_ref, out_ref,
                     *, tile_n, n_rows):
    # Row-index mask replaces padding of the ragged logits arrays: the last
    # block may read past the end of the inputs; those rows are masked here.
    row = (pl.program_id(0) * tile_n
           + lax.broadcasted_iota(jnp.int32, (tile_n, 1), 0))     # (T, 1)
    in_bounds = row < n_rows

    labels = labels_ref[...]                                      # (T, 2) i32
    lp = labels[:, 0:1]
    lpl = labels[:, 1:2]

    pos_sum, pos_cnt = _tile_ce_sums(
        pos_logits_ref[...], lp, in_bounds & (lp != IGNORE_INDEX))
    ply_sum, ply_cnt = _tile_ce_sums(
        player_logits_ref[...], lpl, in_bounds & (lpl != IGNORE_INDEX))

    # Pack the four per-tile scalars into a lane-dense (8, 128) block so the
    # output is one full, unmasked vector store per grid step.
    lane = lax.broadcasted_iota(jnp.int32, (8, 128), 1)
    sub = lax.broadcasted_iota(jnp.int32, (8, 128), 0)
    row0 = sub == 0
    vals = jnp.where(row0 & (lane == 0), pos_sum,
           jnp.where(row0 & (lane == 1), pos_cnt,
           jnp.where(row0 & (lane == 2), ply_sum,
           jnp.where(row0 & (lane == 3), ply_cnt, 0.0))))
    out_ref[...] = vals[None].astype(jnp.float32)


# TODO(synk): for vocab-scale class counts (>8-16K) add a second 'arbitrary'
# grid axis over C with an online logsumexp; unnecessary at these class counts.


def _choose_tile_n(n, c_pos, c_player, itemsize):
    """Batch tile size + vmem limit.

    Budget ~vmem_cap/4 (<=24 MiB) for the double-buffered inputs; tile cap
    1024 rows so per-step pipeline overhead (~0.35us) is well amortized while
    leaving VMEM headroom for in-kernel f32 temporaries.  Rows are aligned to
    the dtype's native sublane packing (8/16/32 for 4/2/1-byte).  The tile is
    also clamped so there are >= 2 grid steps when N allows it, keeping v7x's
    second TensorCore fed via the parallel grid axis.
    """
    try:
        vmem_cap = pltpu.get_tpu_info().vmem_capacity_bytes
    except Exception:  # pragma: no cover - conservative fallback (v7x size)
        vmem_cap = 64 * 1024 * 1024
    budget = min(vmem_cap // 4, 24 * 1024 * 1024)
    vmem_limit = min(vmem_cap // 2, 48 * 1024 * 1024)

    row_align = 8 * max(1, 4 // max(1, itemsize))   # 8 f32, 16 bf16, 32 int8
    # per row: 2 double-buffered logits rows + 2 lane-padded (i32) label rows.
    per_row = 2 * (c_pos + c_player) * itemsize + 2 * 128 * 4
    tile = max(row_align, min(budget // per_row, 1024))
    tile = (tile // row_align) * row_align

    # Keep >= 2 grid steps when possible (v7x megacore); costs at most one
    # extra ~0.35us grid step on single-core generations.
    half = ((pl.cdiv(n, 2) + row_align - 1) // row_align) * row_align
    tile = max(row_align, min(tile, max(half, row_align)))
    return int(tile), int(vmem_limit)


def multi_cross_entropy_loss(out_pos, out_player, label_pos, label_player):
    """out_pos: (N, C_pos), out_player: (N, C_player) float32/bfloat16 logits;
    label_pos / label_player: (N,) integer class indices (-100 = ignore).
    Returns a scalar float32 loss."""
    n, c_pos = out_pos.shape
    n2, c_player = out_player.shape
    assert n == n2

    itemsize = max(jnp.dtype(out_pos.dtype).itemsize,
                   jnp.dtype(out_player.dtype).itemsize)
    tile_n, vmem_limit = _choose_tile_n(n, c_pos, c_player, itemsize)
    num_tiles = pl.cdiv(n, tile_n)

    # Single merged (N, 2) int32 label array: one small DMA / VMEM buffer per
    # grid step instead of two.  No padding of the (large) logits arrays: the
    # last block reads past the end and is masked by row index in the kernel.
    labels = jnp.stack([label_pos.astype(jnp.int32),
                        label_player.astype(jnp.int32)], axis=1)

    nc = n * (c_pos + c_player)
    cost = pl.CostEstimate(
        flops=int(6 * nc),
        transcendentals=int(nc),
        bytes_accessed=int(nc * itemsize + n * 2 * 4
                           + num_tiles * 8 * 128 * 4),
    )

    kernel = functools.partial(_multi_ce_kernel, tile_n=tile_n, n_rows=n)

    partials = pl.pallas_call(
        kernel,
        out_shape=jax.ShapeDtypeStruct((num_tiles, 8, 128), jnp.float32),
        grid=(num_tiles,),
        in_specs=[
            pl.BlockSpec((tile_n, 2), lambda i: (i, 0)),
            pl.BlockSpec((tile_n, c_pos), lambda i: (i, 0)),
            pl.BlockSpec((tile_n, c_player), lambda i: (i, 0)),
        ],
        out_specs=pl.BlockSpec((1, 8, 128), lambda i: (i, 0, 0)),
        compiler_params=pltpu.CompilerParams(
            dimension_semantics=("parallel",),
            vmem_limit_bytes=vmem_limit,
        ),
        cost_estimate=cost,
    )(labels, out_pos, out_player)

    pos_sum = jnp.sum(partials[:, 0, 0])
    pos_cnt = jnp.sum(partials[:, 0, 1])
    ply_sum = jnp.sum(partials[:, 0, 2])
    ply_cnt = jnp.sum(partials[:, 0, 3])
    pos_loss = pos_sum / jnp.maximum(pos_cnt, 1.0)
    player_loss = ply_sum / jnp.maximum(ply_cnt, 1.0)
    return WEIGHT_POS_LOSS * pos_loss + WEIGHT_PLAYER_LOSS * player_loss


def _reference(out_pos, out_player, label_pos, label_player):
    def ce(x, y):
        x = x.astype(jnp.float32)
        valid = y != IGNORE_INDEX
        lse = jax.nn.logsumexp(x, axis=1)
        picked = jnp.take_along_axis(x, jnp.maximum(y, 0)[:, None], axis=1)[:, 0]
        per = jnp.where(valid, lse - picked, 0.0)
        return jnp.sum(per) / jnp.maximum(jnp.sum(valid.astype(jnp.float32)), 1.0)
    return (WEIGHT_POS_LOSS * ce(out_pos, label_pos)
            + WEIGHT_PLAYER_LOSS * ce(out_player, label_player))


if __name__ == "__main__":
    key = jax.random.PRNGKey(0)
    k1, k2, k3, k4 = jax.random.split(key, 4)

    # Case 1: small aligned batch, float32 logits.
    N, C_POS, C_PLAYER = 8, 256, 128
    out_pos = jax.random.normal(k1, (N, C_POS), dtype=jnp.float32)
    out_player = jax.random.normal(k2, (N, C_PLAYER), dtype=jnp.float32)
    label_pos = jax.random.randint(k3, (N,), 0, C_POS, dtype=jnp.int32)
    label_player = jax.random.randint(k4, (N,), 0, C_PLAYER, dtype=jnp.int32)

    loss = jax.block_until_ready(
        multi_cross_entropy_loss(out_pos, out_player, label_pos, label_player))
    ref = _reference(out_pos, out_player, label_pos, label_player)
    assert jnp.allclose(loss, ref, rtol=1e-4, atol=1e-4), (loss, ref)

    # Case 2: ragged batch (un-padded OOB-masking path) with one ignored label.
    N2 = 13
    k5, k6, k7, k8 = jax.random.split(jax.random.PRNGKey(1), 4)
    out_pos2 = jax.random.normal(k5, (N2, C_POS), dtype=jnp.float32)
    out_player2 = jax.random.normal(k6, (N2, C_PLAYER), dtype=jnp.float32)
    label_pos2 = jax.random.randint(k7, (N2,), 0, C_POS, dtype=jnp.int32)
    label_pos2 = label_pos2.at[3].set(IGNORE_INDEX)
    label_player2 = jax.random.randint(k8, (N2,), 0, C_PLAYER, dtype=jnp.int32)

    loss2 = jax.block_until_ready(
        multi_cross_entropy_loss(out_pos2, out_player2, label_pos2, label_player2))
    ref2 = _reference(out_pos2, out_player2, label_pos2, label_player2)
    assert jnp.allclose(loss2, ref2, rtol=1e-4, atol=1e-4), (loss2, ref2)

    # Case 3: bfloat16 logits, ragged batch (exercises 16-row alignment).
    N3 = 24
    k9, k10, k11, k12 = jax.random.split(jax.random.PRNGKey(2), 4)
    out_pos3 = jax.random.normal(k9, (N3, C_POS), dtype=jnp.bfloat16)
    out_player3 = jax.random.normal(k10, (N3, C_PLAYER), dtype=jnp.bfloat16)
    label_pos3 = jax.random.randint(k11, (N3,), 0, C_POS, dtype=jnp.int32)
    label_player3 = jax.random.randint(k12, (N3,), 0, C_PLAYER, dtype=jnp.int32)
    label_player3 = label_player3.at[7].set(IGNORE_INDEX)

    loss3 = jax.block_until_ready(
        multi_cross_entropy_loss(out_pos3, out_player3, label_pos3, label_player3))
    ref3 = _reference(out_pos3, out_player3, label_pos3, label_player3)
    assert jnp.allclose(loss3, ref3, rtol=1e-3, atol=1e-3), (loss3, ref3)

    print("KERNEL_OK")
</pallas_src>

<mosaic_0001>
module attributes {stable_mosaic.version = 11 : i64} {
  func.func @_multi_ce_kernel(%arg0: i32, %arg1: memref<8x2xi32, #tpu.memory_space<vmem>>, %arg2: memref<8x256xf32, #tpu.memory_space<vmem>>, %arg3: memref<8x128xf32, #tpu.memory_space<vmem>>, %arg4: memref<1x8x128xf32, #tpu.memory_space<vmem>>) attributes {dimension_semantics = [#tpu.dimension_semantics<parallel>], iteration_bounds = array<i64: 1>, scalar_prefetch = 0 : i64, scratch_operands = 0 : i64, tpu.core_type = #tpu.core_type<tc>, window_params = [{transform_indices = @transform_0, window_bounds = array<i64: 8, 2>}, {transform_indices = @transform_1, window_bounds = array<i64: 8, 256>}, {transform_indices = @transform_2, window_bounds = array<i64: 8, 128>}, {transform_indices = @transform_3, window_bounds = array<i64: 1, 8, 128>}]} {
    %c8_i32 = arith.constant 8 : i32
    %0 = arith.muli %arg0, %c8_i32 : i32
    %1 = tpu.iota {dimensions = array<i32: 0>} : vector<8x1xi32>
    %2 = vector.broadcast %0 : i32 to vector<8x1xi32>
    %3 = arith.addi %2, %1 : vector<8x1xi32>
    %c8_i32_0 = arith.constant 8 : i32
    %4 = vector.broadcast %c8_i32_0 : i32 to vector<8x1xi32>
    %5 = arith.cmpi slt, %3, %4 : vector<8x1xi32>
    %c0 = arith.constant 0 : index
    %c0_1 = arith.constant 0 : index
    %6 = vector.load %arg1[%c0, %c0_1] : memref<8x2xi32, #tpu.memory_space<vmem>>, vector<8x2xi32>
    %7 = vector.extract_strided_slice %6 {offsets = [0, 0], sizes = [8, 1], strides = [1, 1]} : vector<8x2xi32> to vector<8x1xi32>
    %8 = vector.extract_strided_slice %6 {offsets = [0, 1], sizes = [8, 1], strides = [1, 1]} : vector<8x2xi32> to vector<8x1xi32>
    %c0_2 = arith.constant 0 : index
    %c0_3 = arith.constant 0 : index
    %9 = vector.load %arg2[%c0_2, %c0_3] : memref<8x256xf32, #tpu.memory_space<vmem>>, vector<8x256xf32>
    %c-100_i32 = arith.constant -100 : i32
    %10 = vector.broadcast %c-100_i32 : i32 to vector<8x1xi32>
    %11 = arith.cmpi ne, %7, %10 : vector<8x1xi32>
    %12 = arith.andi %5, %11 : vector<8x1xi1>
    %cst = arith.constant dense<0xFF800000> : vector<8xf32>
    %13 = vector.multi_reduction <maximumf>, %9, %cst [1] : vector<8x256xf32> to vector<8xf32>
    %14 = vector.shape_cast %13 : vector<8xf32> to vector<8x1xf32>
    %15 = vector.broadcast %14 : vector<8x1xf32> to vector<8x256xf32>
    %16 = arith.subf %9, %15 : vector<8x256xf32>
    %17 = math.exp %16 : vector<8x256xf32>
    %cst_4 = arith.constant dense<0.000000e+00> : vector<8xf32>
    %18 = vector.multi_reduction <add>, %17, %cst_4 [1] : vector<8x256xf32> to vector<8xf32>
    %19 = vector.shape_cast %18 : vector<8xf32> to vector<8x1xf32>
    %20 = math.log %19 : vector<8x1xf32>
    %21 = arith.addf %20, %14 : vector<8x1xf32>
    %22 = tpu.iota {dimensions = array<i32: 1>} : vector<8x256xi32>
    %23 = vector.broadcast %7 : vector<8x1xi32> to vector<8x256xi32>
    %24 = arith.cmpi eq, %22, %23 : vector<8x256xi32>
    %25 = vector.broadcast %12 : vector<8x1xi1> to vector<8x256xi1>
    %26 = arith.andi %24, %25 : vector<8x256xi1>
    %cst_5 = arith.constant 0.000000e+00 : f32
    %27 = vector.broadcast %cst_5 : f32 to vector<8x256xf32>
    %28 = arith.select %26, %9, %27 : vector<8x256xi1>, vector<8x256xf32>
    %29 = vector.shape_cast %28 : vector<8x256xf32> to vector<1x8x256xf32>
    %cst_6 = arith.constant dense<0.000000e+00> : vector<1xf32>
    %30 = vector.multi_reduction <add>, %29, %cst_6 [1, 2] : vector<1x8x256xf32> to vector<1xf32>
    %31 = vector.shape_cast %30 : vector<1xf32> to vector<1x1x1xf32>
    %32 = vector.extract %31[0, 0, 0] : f32 from vector<1x1x1xf32>
    %cst_7 = arith.constant 0.000000e+00 : f32
    %33 = vector.broadcast %cst_7 : f32 to vector<8x1xf32>
    %34 = arith.select %12, %21, %33 : vector<8x1xi1>, vector<8x1xf32>
    %35 = vector.shape_cast %34 : vector<8x1xf32> to vector<1x8x1xf32>
    %cst_8 = arith.constant dense<0.000000e+00> : vector<1xf32>
    %36 = vector.multi_reduction <add>, %35, %cst_8 [1, 2] : vector<1x8x1xf32> to vector<1xf32>
    %37 = vector.shape_cast %36 : vector<1xf32> to vector<1x1x1xf32>
    %38 = vector.extract %37[0, 0, 0] : f32 from vector<1x1x1xf32>
    %39 = arith.subf %38, %32 : f32
    %40 = arith.extui %12 : vector<8x1xi1> to vector<8x1xi32>
    %41 = arith.sitofp %40 : vector<8x1xi32> to vector<8x1xf32>
    %42 = vector.shape_cast %41 : vector<8x1xf32> to vector<1x8x1xf32>
    %cst_9 = arith.constant dense<0.000000e+00> : vector<1xf32>
    %43 = vector.multi_reduction <add>, %42, %cst_9 [1, 2] : vector<1x8x1xf32> to vector<1xf32>
    %44 = vector.shape_cast %43 : vector<1xf32> to vector<1x1x1xf32>
    %45 = vector.extract %44[0, 0, 0] : f32 from vector<1x1x1xf32>
    %c0_10 = arith.constant 0 : index
    %c0_11 = arith.constant 0 : index
    %46 = vector.load %arg3[%c0_10, %c0_11] : memref<8x128xf32, #tpu.memory_space<vmem>>, vector<8x128xf32>
    %c-100_i32_12 = arith.constant -100 : i32
    %47 = vector.broadcast %c-100_i32_12 : i32 to vector<8x1xi32>
    %48 = arith.cmpi ne, %8, %47 : vector<8x1xi32>
    %49 = arith.andi %5, %48 : vector<8x1xi1>
    %cst_13 = arith.constant dense<0xFF800000> : vector<8xf32>
    %50 = vector.multi_reduction <maximumf>, %46, %cst_13 [1] : vector<8x128xf32> to vector<8xf32>
    %51 = vector.shape_cast %50 : vector<8xf32> to vector<8x1xf32>
    %52 = vector.broadcast %51 : vector<8x1xf32> to vector<8x128xf32>
    %53 = arith.subf %46, %52 : vector<8x128xf32>
    %54 = math.exp %53 : vector<8x128xf32>
    %cst_14 = arith.constant dense<0.000000e+00> : vector<8xf32>
    %55 = vector.multi_reduction <add>, %54, %cst_14 [1] : vector<8x128xf32> to vector<8xf32>
    %56 = vector.shape_cast %55 : vector<8xf32> to vector<8x1xf32>
    %57 = math.log %56 : vector<8x1xf32>
    %58 = arith.addf %57, %51 : vector<8x1xf32>
    %59 = tpu.iota {dimensions = array<i32: 1>} : vector<8x128xi32>
    %60 = vector.broadcast %8 : vector<8x1xi32> to vector<8x128xi32>
    %61 = arith.cmpi eq, %59, %60 : vector<8x128xi32>
    %62 = vector.broadcast %49 : vector<8x1xi1> to vector<8x128xi1>
    %63 = arith.andi %61, %62 : vector<8x128xi1>
    %cst_15 = arith.constant 0.000000e+00 : f32
    %64 = vector.broadcast %cst_15 : f32 to vector<8x128xf32>
    %65 = arith.select %63, %46, %64 : vector<8x128xi1>, vector<8x128xf32>
    %66 = vector.shape_cast %65 : vector<8x128xf32> to vector<1x8x128xf32>
    %cst_16 = arith.constant dense<0.000000e+00> : vector<1xf32>
    %67 = vector.multi_reduction <add>, %66, %cst_16 [1, 2] : vector<1x8x128xf32> to vector<1xf32>
    %68 = vector.shape_cast %67 : vector<1xf32> to vector<1x1x1xf32>
    %69 = vector.extract %68[0, 0, 0] : f32 from vector<1x1x1xf32>
    %cst_17 = arith.constant 0.000000e+00 : f32
    %70 = vector.broadcast %cst_17 : f32 to vector<8x1xf32>
    %71 = arith.select %49, %58, %70 : vector<8x1xi1>, vector<8x1xf32>
    %72 = vector.shape_cast %71 : vector<8x1xf32> to vector<1x8x1xf32>
    %cst_18 = arith.constant dense<0.000000e+00> : vector<1xf32>
    %73 = vector.multi_reduction <add>, %72, %cst_18 [1, 2] : vector<1x8x1xf32> to vector<1xf32>
    %74 = vector.shape_cast %73 : vector<1xf32> to vector<1x1x1xf32>
    %75 = vector.extract %74[0, 0, 0] : f32 from vector<1x1x1xf32>
    %76 = arith.subf %75, %69 : f32
    %77 = arith.extui %49 : vector<8x1xi1> to vector<8x1xi32>
    %78 = arith.sitofp %77 : vector<8x1xi32> to vector<8x1xf32>
    %79 = vector.shape_cast %78 : vector<8x1xf32> to vector<1x8x1xf32>
    %cst_19 = arith.constant dense<0.000000e+00> : vector<1xf32>
    %80 = vector.multi_reduction <add>, %79, %cst_19 [1, 2] : vector<1x8x1xf32> to vector<1xf32>
    %81 = vector.shape_cast %80 : vector<1xf32> to vector<1x1x1xf32>
    %82 = vector.extract %81[0, 0, 0] : f32 from vector<1x1x1xf32>
    %83 = tpu.iota {dimensions = array<i32: 1>} : vector<8x128xi32>
    %84 = tpu.iota {dimensions = array<i32: 0>} : vector<8x128xi32>
    %c0_i32 = arith.constant 0 : i32
    %85 = vector.broadcast %c0_i32 : i32 to vector<8x128xi32>
    %86 = arith.cmpi eq, %84, %85 : vector<8x128xi32>
    %c0_i32_20 = arith.constant 0 : i32
    %87 = vector.broadcast %c0_i32_20 : i32 to vector<8x128xi32>
    %88 = arith.cmpi eq, %83, %87 : vector<8x128xi32>
    %89 = arith.andi %86, %88 : vector<8x128xi1>
    %c1_i32 = arith.constant 1 : i32
    %90 = vector.broadcast %c1_i32 : i32 to vector<8x128xi32>
    %91 = arith.cmpi eq, %83, %90 : vector<8x128xi32>
    %92 = arith.andi %86, %91 : vector<8x128xi1>
    %c2_i32 = arith.constant 2 : i32
    %93 = vector.broadcast %c2_i32 : i32 to vector<8x128xi32>
    %94 = arith.cmpi eq, %83, %93 : vector<8x128xi32>
    %95 = arith.andi %86, %94 : vector<8x128xi1>
    %c3_i32 = arith.constant 3 : i32
    %96 = vector.broadcast %c3_i32 : i32 to vector<8x128xi32>
    %97 = arith.cmpi eq, %83, %96 : vector<8x128xi32>
    %98 = arith.andi %86, %97 : vector<8x128xi1>
    %cst_21 = arith.constant 0.000000e+00 : f32
    %99 = vector.broadcast %82 : f32 to vector<8x128xf32>
    %100 = vector.broadcast %cst_21 : f32 to vector<8x128xf32>
    %101 = arith.select %98, %99, %100 : vector<8x128xi1>, vector<8x128xf32>
    %102 = vector.broadcast %76 : f32 to vector<8x128xf32>
    %103 = arith.select %95, %102, %101 : vector<8x128xi1>, vector<8x128xf32>
    %104 = vector.broadcast %45 : f32 to vector<8x128xf32>
    %105 = arith.select %92, %104, %103 : vector<8x128xi1>, vector<8x128xf32>
    %106 = vector.broadcast %39 : f32 to vector<8x128xf32>
    %107 = arith.select %89, %106, %105 : vector<8x128xi1>, vector<8x128xf32>
    %108 = vector.shape_cast %107 : vector<8x128xf32> to vector<1x8x128xf32>
    %c0_22 = arith.constant 0 : index
    %c0_23 = arith.constant 0 : index
    %c0_24 = arith.constant 0 : index
    %109 = vector.load %arg4[%c0_22, %c0_23, %c0_24] : memref<1x8x128xf32, #tpu.memory_space<vmem>>, vector<1x8x128xf32>
    tpu.vector_store %arg4[%c0_22, %c0_23, %c0_24], %108 {strides = array<i32>} : memref<1x8x128xf32, #tpu.memory_space<vmem>>, vector<1x8x128xf32>,
    return
  }
  func.func @transform_0(%arg0: i32) -> (i32, i32) {
    %c0_i32 = arith.constant 0 : i32
    %c0_i32_0 = arith.constant 0 : i32
    return %arg0, %c0_i32 : i32, i32
  }
  func.func @transform_1(%arg0: i32) -> (i32, i32) {
    %c0_i32 = arith.constant 0 : i32
    %c0_i32_0 = arith.constant 0 : i32
    return %arg0, %c0_i32 : i32, i32
  }
  func.func @transform_2(%arg0: i32) -> (i32, i32) {
    %c0_i32 = arith.constant 0 : i32
    %c0_i32_0 = arith.constant 0 : i32
    return %arg0, %c0_i32 : i32, i32
  }
  func.func @transform_3(%arg0: i32) -> (i32, i32, i32) {
    %c0_i32 = arith.constant 0 : i32
    %c0_i32_0 = arith.constant 0 : i32
    %c0_i32_1 = arith.constant 0 : i32
    return %arg0, %c0_i32, %c0_i32_0 : i32, i32, i32
  }
}

</mosaic_0001>

<llo_original>
// kernel: tpu_custom_call.1
$region0: #{tpu_custom_call.1}
  #allocation0 [shape = 'u32[]', space=smem, size = 0x4, offset = 0x4, fixed_abs, tag = 'smem constant byte address 0x4 - core index']
  #allocation1 [shape = 'u32[144,128]{1,0:T(1,128)}', space=vmem, size = 0x12000, scoped, tag = 'internal scratch']
  %s0 = inlined_call_operand.vmem [shape: s32[8,2], index: 0, kind: input, shape index: {}]
  %s1 = inlined_call_operand.hbm [shape: f32[8,256], index: 1, kind: input, shape index: {}]
  %s2 = inlined_call_operand.vmem [shape: f32[8,128], index: 2, kind: input, shape index: {}]
  %s3 = inlined_call_operand.hbm [shape: f32[1,8,128], index: 3, kind: output, shape index: {}]
  %s4 = sld [smem:[#allocation0]]
  $region26: #{tpu_custom_call.1} parent=0
    _
  %s6 = ssub.s32 1, %s4
  %s7 = scalar_select 0, %s6, %s4
  $region1: #{tpu_custom_call.1} parent=0
    #allocation2 [shape = 'u8[8192]{0}', space=vmem, size = 0x2000, scoped, tag = 'input window, operand 1, single buffered']
    #allocation3 [shape = 's32[1]{0}', space=sflag, size = 0x4, scoped, tag = 'scoped memory for tpu_custom_call.1']
    #allocation4 [shape = 's32[1]{0}', space=sflag, size = 0x4, scoped, tag = 'scoped memory for tpu_custom_call.1']
    #allocation5 [shape = 'u8[4096]{0}', space=vmem, size = 0x1000, scoped, tag = 'output window, operand 0, single buffered']
    %8 = vsyncpa [#allocation3], 0
    %9 = vsyncpa [#allocation4], 0
    // Predicated region
    $region2: #{tpu_custom_call.1} parent=1 // pred_check
      _
    $region3: #{tpu_custom_call.1} parent=1 // pred_check_branch
      %11 = sbr.rel (0) target = $region5
    $region4: #{tpu_custom_call.1} parent=1 // pred_region
      _
    $region5: #{tpu_custom_call.1} parent=1 // pred_fallthru
      _
    // Predicated region
    $region6: #{tpu_custom_call.1} parent=1 // pred_check
      _
    $region7: #{tpu_custom_call.1} parent=1 // pred_check_branch
      %13 = sbr.rel (0) target = $region9
    $region8: #{tpu_custom_call.1} parent=1 // pred_region
      %s15 = ssub.s32 256, 256
      %16 = vsyncadd [#allocation3], %s15
      %s18 = sshll.u32 [#allocation2], 4
      %s19 = int_to_ptr.vmem [resolvable:$true] %s18
      %21 = dma.hbm_to_vmem [thread:$0]  %s1, 256, %s19, [#allocation3]
    $region9: #{tpu_custom_call.1} parent=1 // pred_fallthru
      _
    // Predicated region
    $region10: #{tpu_custom_call.1} parent=1 // pred_check
      _
    $region11: #{tpu_custom_call.1} parent=1 // pred_check_branch
      %23 = sbr.rel (0) target = $region13
    $region12: #{tpu_custom_call.1} parent=1 // pred_region
      _
    $region13: #{tpu_custom_call.1} parent=1 // pred_fallthru
      _
    // Predicated region
    $region14: #{tpu_custom_call.1} parent=1 // pred_check
      _
    $region15: #{tpu_custom_call.1} parent=1 // pred_check_branch
      %25 = sbr.rel (0) target = $region17
    $region16: #{tpu_custom_call.1} parent=1 // pred_region
      %26 = dma.done [#allocation3], 256
    $region17: #{tpu_custom_call.1} parent=1 // pred_fallthru
      _
    %s27 = smul.u32 0, 8
    %v28 = vlaneseq
    %v29 = vshrl.u32 %v28, 7
    %v30 = vstv %s27
    %v31 = vadd.s32 %v30, %v29
    %vm32 = vcmp.lt.s32.totalorder %v31, 8
    %v33 = vld [vmem:[%s0] sm:$0xff]
    %v34 = vld [vmem:[#allocation2] sm:$0xff]
    %v35 = vld [vmem:[#allocation2 + $0x8] sm:$0xff]
    %vm36 = vcmp.ne.s32.totalorder %v33, 4294967196
    %vm37 = vmand %vm32, %vm36
    %v38 = vmax.f32 %v34, %v35
    %39 = vmax.xlane.f32.xlu0 %v38
    %v40 = vpop.xlane.xlu0 %39
    %v41 = vsub.f32 %v34, %v40
    %v42 = vsub.f32 %v35, %v40
    %v43 = vmul.f32 %v41, 1.442695
    %v44 = vpow.pop %v43
    %v45 = vmul.f32 %v42, 1.442695
    %v46 = vpow.pop %v45
    %v47 = vadd.f32 %v44, %v46
    %48 = vadd.xlane.f32.xlu0 %v47
    %v49 = vpop.xlane.xlu0 %48
    %v50 = vlog2.pop %v49
    %v51 = vmul.f32 %v50, 0.6931472
    %v52 = vadd.f32 %v51, %v40
    %v53 = vlaneseq
    %v54 = vand.u32 %v53, 127
    %v55 = vadd.s32 %v54, 128
    %56 = vset.pattern.permute.xlu0 0
    %57 = vperm.xlu0 %56, %v33
    %v58 = vpop.permute.xlu0 %57
    %vm59 = vcmp.eq.s32.totalorder %v54, %v58
    %vm60 = vcmp.eq.s32.totalorder %v55, %v58
    %v61 = vsel %vm37, 1, 0
    %62 = vset.pattern.permute.xlu0 0
    %63 = vperm.xlu0 %62, %v61
    %v64 = vpop.permute.xlu0 %63
    %vm65 = vcmp.eq.s32.totalorder %v64, 1
    %vm66 = vmand %vm59, %vm65
    %vm67 = vmand %vm60, %vm65
    %v68 = vsel %vm66, %v34, 0.0
    %v69 = vsel %vm67, %v35, 0.0
    %v70 = vadd.f32 %v68, %v69
    %71 = vadd.xlane.f32.xlu0 %v70
    %v72 = vpop.xlane.xlu0 %71
    %v73 = vrot.slane %v72, 4
    %v74 = vadd.f32 %v72, %v73
    %v75 = vrot.slane %v74, 2
    %v76 = vadd.f32 %v74, %v75
    %v77 = vrot.slane %v76, 1
    %v78 = vadd.f32 %v76, %v77
    %s79 = vtos %v78
    %v80 = vsel %vm37, %v52, 0.0
    %vm81 = vcmask 7168
    %v82 = vsel %vm81, %v80, 0.0
    %83 = vadd.xlane.f32.xlu0 %v82
    %v84 = vpop.xlane.xlu0 %83
    %v85 = vrot.slane %v84, 4
    %v86 = vadd.f32 %v84, %v85
    %v87 = vrot.slane %v86, 2
    %v88 = vadd.f32 %v86, %v87
    %v89 = vrot.slane %v88, 1
    %v90 = vadd.f32 %v88, %v89
    %s91 = vtos %v90
    %s92 = ssub.f32 %s91, %s79
    %v93 = vcvt.s32.f32 %v61
    %v94 = vsel %vm81, %v93, 0.0
    %95 = vadd.xlane.f32.xlu0 %v94
    %v96 = vpop.xlane.xlu0 %95
    %v97 = vrot.slane %v96, 4
    %v98 = vadd.f32 %v96, %v97
    %v99 = vrot.slane %v98, 2
    %v100 = vadd.f32 %v98, %v99
    %v101 = vrot.slane %v100, 1
    %v102 = vadd.f32 %v100, %v101
    %s103 = vtos %v102
    %v104 = vld [vmem:[%s2] sm:$0xff]
    %105 = vmax.xlane.f32.xlu0 %v104
    %v106 = vpop.xlane.xlu0 %105
    %v107 = vsub.f32 %v104, %v106
    %v108 = vmul.f32 %v107, 1.442695
    %v109 = vpow.pop %v108
    %110 = vadd.xlane.f32.xlu0 %v109
    %v111 = vpop.xlane.xlu0 %110
    %v112 = vlog2.pop %v111
    %v113 = vmul.f32 %v112, 0.6931472
    %v114 = vadd.f32 %v113, %v106
    %115 = vset.pattern.permute.xlu0 1
    %116 = vperm.xlu0 %115, %v33
    %v117 = vpop.permute.xlu0 %116
    %vm118 = vcmp.eq.s32.totalorder %v54, %v117
    %119 = vset.pattern.permute.xlu0 1
    %120 = vperm.xlu0 %119, %v61
    %v121 = vpop.permute.xlu0 %120
    %vm122 = vcmp.eq.s32.totalorder %v121, 1
    %vm123 = vmand %vm118, %vm122
    %v124 = vsel %vm123, %v104, 0.0
    %125 = vadd.xlane.f32.xlu0 %v124
    %v126 = vpop.xlane.xlu0 %125
    %v127 = vrot.slane %v126, 4
    %v128 = vadd.f32 %v126, %v127
    %v129 = vrot.slane %v128, 2
    %v130 = vadd.f32 %v128, %v129
    %v131 = vrot.slane %v130, 1
    %v132 = vadd.f32 %v130, %v131
    %s133 = vtos %v132
    %v134 = vsel %vm37, %v114, 0.0
    %136 = vrot.lane.b32.xlu0 %v134, 127
    %v137 = vpop.permute.xlu0 %136
    %v139 = vsel %vm81, %v137, 0.0
    %140 = vadd.xlane.f32.xlu0 %v139
    %v141 = vpop.xlane.xlu0 %140
    %v142 = vrot.slane %v141, 4
    %v143 = vadd.f32 %v141, %v142
    %v144 = vrot.slane %v143, 2
    %v145 = vadd.f32 %v143, %v144
    %v146 = vrot.slane %v145, 1
    %v147 = vadd.f32 %v145, %v146
    %s148 = vtos %v147
    %s149 = ssub.f32 %s148, %s133
    %151 = vrot.lane.b32.xlu0 %v93, 127
    %v152 = vpop.permute.xlu0 %151
    %v154 = vsel %vm81, %v152, 0.0
    %155 = vadd.xlane.f32.xlu0 %v154
    %v156 = vpop.xlane.xlu0 %155
    %v157 = vrot.slane %v156, 4
    %v158 = vadd.f32 %v156, %v157
    %v159 = vrot.slane %v158, 2
    %v160 = vadd.f32 %v158, %v159
    %v161 = vrot.slane %v160, 1
    %v162 = vadd.f32 %v160, %v161
    %s163 = vtos %v162
    %vm164 = vcmp.eq.s32.totalorder %v29, 0
    %vm165 = vcmp.eq.s32.totalorder %v54, 0
    %vm166 = vmand %vm164, %vm165
    %vm167 = vcmp.eq.s32.totalorder %v54, 1
    %vm168 = vmand %vm164, %vm167
    %vm169 = vcmp.eq.s32.totalorder %v54, 2
    %vm170 = vmand %vm164, %vm169
    %vm171 = vcmp.eq.s32.totalorder %v54, 3
    %vm172 = vmand %vm164, %vm171
    %v173 = vstv %s163
    %v174 = vsel %vm172, %v173, 0.0
    %v175 = vstv %s149
    %v176 = vsel %vm170, %v175, %v174
    %v177 = vstv %s103
    %v178 = vsel %vm168, %v177, %v176
    %v179 = vstv %s92
    %v180 = vsel %vm166, %v179, %v178
    %181 = vst [vmem:[#allocation5] sm:$0xff] %v180
    // Predicated region
    $region18: #{tpu_custom_call.1} parent=1 // pred_check
      _
    $region19: #{tpu_custom_call.1} parent=1 // pred_check_branch
      %183 = sbr.rel (0) target = $region21
    $region20: #{tpu_custom_call.1} parent=1 // pred_region
      %s185 = ssub.s32 128, 128
      %186 = vsyncadd [#allocation4], %s185
      %s188 = sshll.u32 [#allocation5], 4
      %s189 = int_to_ptr.vmem [resolvable:$true] %s188
      %191 = dma.vmem_to_hbm [thread:$0]  %s189, 128, %s3, [#allocation4]
    $region21: #{tpu_custom_call.1} parent=1 // pred_fallthru
      _
    // Predicated region
    $region22: #{tpu_custom_call.1} parent=1 // pred_check
      _
    $region23: #{tpu_custom_call.1} parent=1 // pred_check_branch
      %193 = sbr.rel (0) target = $region25
    $region24: #{tpu_custom_call.1} parent=1 // pred_region
      %194 = dma.done [#allocation4], 128
    $region25: #{tpu_custom_call.1} parent=1 // pred_fallthru
      _
    %195 = vsyncpa [#allocation3], 1
    %196 = vsyncpa [#allocation4], 1

</llo_original>
